<compile_context>
chip_gen: v7x
topology: tpu7x:2x2x1
jax: 0.10.0
libtpu: 0.0.40
codegen_flags: <defaults>
</compile_context>

<pallas_src>
import functools
import math

import jax
import jax.numpy as jnp
from jax.experimental import pallas as pl
from jax.experimental.pallas import tpu as pltpu


def _round_up(x, m):
    return ((x + m - 1) // m) * m


def _cdiv(a, b):
    return -(-a // b)


_NEG_INF_PAD = -1e30   # finite "-inf" bias for padded vocab columns


@functools.lru_cache(maxsize=1)
def _default_vmem_budget_bytes():
    """Generation-aware VMEM budget: ~75% of the chip's per-core VMEM.

    v5e/v6e (128 MiB) -> ~96 MiB; v7x (64 MiB/TC) -> ~48 MiB.  Falls back to a
    conservative 48 MiB if the hardware query is unavailable.
    """
    cap = None
    try:
        cap = getattr(pltpu.get_tpu_info(), "vmem_capacity_bytes", None)
    except Exception:  # probe only; any failure -> conservative default
        cap = None
    if not cap:
        cap = 64 * 1024 * 1024
    return max(min(int(cap) * 3 // 4, 100 * 1024 * 1024), 32 * 1024 * 1024)


@functools.lru_cache(maxsize=1)
def _single_buffer_supported():
    """Probe (once, on a tiny kernel) whether pipeline_mode=pl.Buffered(1) lowers here.

    Keeps the real pallas_call free of broad try/except fallbacks: if the probe fails
    for any reason we simply plan for double-buffered invariants.
    """
    try:
        def _probe(x_ref, o_ref):
            o_ref[...] = x_ref[...] + 1.0

        x = jnp.arange(8 * 128, dtype=jnp.float32).reshape(8, 128)
        out = pl.pallas_call(
            _probe,
            out_shape=jax.ShapeDtypeStruct((16, 128), jnp.float32),
            grid=(2,),
            in_specs=[pl.BlockSpec((8, 128), lambda i: (0, 0),
                                   pipeline_mode=pl.Buffered(1))],
            out_specs=pl.BlockSpec((8, 128), lambda i: (i, 0)),
        )(x)
        out = jax.block_until_ready(out)
        expect = jnp.concatenate([x + 1.0, x + 1.0], axis=0)
        return bool(jnp.allclose(out, expect))
    except Exception:  # probe only: any failure => no single-buffering
        return False


# --------------------------------------------------------------------------
# Path 1: full vocab resident in VMEM (single pass).
# The row tile is processed in n_sub independent sub-tiles so the scheduler can
# overlap the MXU matmul of sub-tile k+1 with the VPU/XLU/EUP softmax epilogue
# of sub-tile k.
# --------------------------------------------------------------------------
def _proj_logsoftmax_fullv_kernel(x_ref, w_ref, b_ref, o_ref, *, n_sub):
    w = w_ref[...]
    b = b_ref[...].astype(jnp.float32)
    tm = x_ref.shape[0]
    sub = tm // n_sub
    for s in range(n_sub):                      # static, fully unrolled
        rows = pl.ds(s * sub, sub)
        logits = jnp.dot(x_ref[rows, :], w,
                         preferred_element_type=jnp.float32) + b
        m = jnp.max(logits, axis=-1, keepdims=True)
        shifted = logits - m
        lse = jnp.log(jnp.sum(jnp.exp(shifted), axis=-1, keepdims=True))
        o_ref[rows, :] = (shifted - lse).astype(o_ref.dtype)


# --------------------------------------------------------------------------
# Path 2: vocab tiled, grid = (pass, vocab_tile, row_tile), rows innermost.
#   pass p==0: accumulate running max m and running sum l per row (full-M scratch).
#   pass p==1: recompute logits tile and write logits - m - log(l).
# Weight block index depends only on the vocab-tile axis -> the full weight is
# DMA'd 2x total (not 2x per row tile).
# --------------------------------------------------------------------------
def _proj_logsoftmax_vtile_kernel(x_ref, w_ref, b_ref, o_ref, m_ref, l_ref):
    tm = x_ref.shape[0]
    p = pl.program_id(0)        # 0 = stats pass, 1 = write pass
    j = pl.program_id(1)        # vocab tile index
    i = pl.program_id(2)        # row tile index
    row0 = pl.multiple_of(i * tm, tm)
    rows = pl.ds(row0, tm)

    logits = (
        jnp.dot(x_ref[...], w_ref[...], preferred_element_type=jnp.float32)
        + b_ref[...].astype(jnp.float32)
    )

    @pl.when(jnp.logical_and(p == 0, j == 0))
    def _():
        m_ref[rows, :] = jnp.full((tm, 1), -jnp.inf, jnp.float32)
        l_ref[rows, :] = jnp.zeros((tm, 1), jnp.float32)

    @pl.when(p == 0)
    def _():
        m_prev = m_ref[rows, :]
        m_new = jnp.maximum(m_prev, jnp.max(logits, axis=-1, keepdims=True))
        l_ref[rows, :] = (l_ref[rows, :] * jnp.exp(m_prev - m_new)
                          + jnp.sum(jnp.exp(logits - m_new), axis=-1,
                                    keepdims=True))
        m_ref[rows, :] = m_new

    @pl.when(p == 1)
    def _():
        o_ref[...] = (logits - m_ref[rows, :]
                      - jnp.log(l_ref[rows, :])).astype(o_ref.dtype)


# --------------------------------------------------------------------------
# Wrapper
# --------------------------------------------------------------------------
def projection_layer(x, weight, bias, *, tm=512, tv=None, out_dtype=None,
                     compute_dtype="auto", vmem_budget_bytes=None):
    """log_softmax(x @ weight + bias, axis=-1).

    x: (B, S, D); weight: (D, V) [transpose of torch's (V, D)]; bias: (V,).
    out_dtype defaults to x.dtype (matches PyTorch); pass jnp.bfloat16 to halve
    the dominant (M, V) output HBM write when the consumer tolerates bf16
    log-probs.  compute_dtype="auto" uses bf16 matmul operands for f32 inputs
    (f32 accumulation / epilogue); pass None for full f32 matmuls.
    """
    B, S, D = x.shape
    V = weight.shape[1]
    assert weight.shape[0] == D and bias.shape == (V,)
    if out_dtype is None:
        out_dtype = x.dtype
    if vmem_budget_bytes is None:
        vmem_budget_bytes = _default_vmem_budget_bytes()
    if isinstance(compute_dtype, str) and compute_dtype == "auto":
        compute_dtype = jnp.bfloat16 if x.dtype == jnp.float32 else None

    M = B * S
    x2d = x.reshape(M, D)
    w_c = weight
    if compute_dtype is not None:
        cd = jnp.dtype(compute_dtype)
        if x2d.dtype != cd:
            x2d = x2d.astype(cd)
        if w_c.dtype != cd:
            # Pass the weight to the kernel in the compute dtype so the HBM read
            # (the dominant bytes term for LM heads) is halved for bf16.
            w_c = w_c.astype(cd)

    xsz = jnp.dtype(x2d.dtype).itemsize
    wsz = jnp.dtype(w_c.dtype).itemsize
    bsz = jnp.dtype(bias.dtype).itemsize
    osz = jnp.dtype(out_dtype).itemsize

    # Row alignment: native sublane packing of every dtype that tiles on rows
    # (8 for 4-byte, 16 for 2-byte, 32 for 1-byte).
    row_align = max(32 // xsz, 32 // osz, 8)

    tm = int(tm)
    tm = max(row_align, min(tm, _round_up(M, row_align)))
    tm = _round_up(tm, row_align)
    # v7x megacore headroom: keep >= 4 row tiles when M is big enough so a
    # "parallel" row axis can feed both TensorCores.
    while tm >= 2 * max(row_align, 128) and _cdiv(M, tm) < 4:
        tm //= 2

    D_lanes = _round_up(D, 128)
    V_lanes = _round_up(V, 128)

    # ---------------- full-vocab single-pass path ----------------
    single_ok = _single_buffer_supported()
    wbuf = 1 if single_ok else 2     # fit test matches the Buffered(1) request
    fullv_bytes = (wbuf * D * V_lanes * wsz          # resident weight
                   + wbuf * 8 * V_lanes * bsz        # resident bias (sublane-padded)
                   + 2 * tm * D_lanes * xsz          # x double buffer
                   + 2 * tm * V_lanes * osz          # out double buffer
                   + (1 << 20))                      # misc headroom
    use_fullv = (tv is None) and (fullv_bytes <= vmem_budget_bytes)

    if use_fullv:
        M_pad = _round_up(M, tm)
        if M_pad != M:
            x2d = jnp.pad(x2d, ((0, M_pad - M), (0, 0)))
        b2d = bias.reshape(1, V)
        n_sub = 2 if (tm >= 64 and tm % (2 * row_align) == 0) else 1
        inv_kwargs = dict(pipeline_mode=pl.Buffered(1)) if single_ok else {}
        cost = pl.CostEstimate(
            flops=2 * M_pad * D * V,
            transcendentals=M_pad * V,
            bytes_accessed=(M_pad * D * xsz + D * V * wsz + V * bsz
                            + M_pad * V * osz),
        )
        out = pl.pallas_call(
            functools.partial(_proj_logsoftmax_fullv_kernel, n_sub=n_sub),
            out_shape=jax.ShapeDtypeStruct((M_pad, V), out_dtype),
            grid_spec=pltpu.PrefetchScalarGridSpec(
                num_scalar_prefetch=0,
                grid=(M_pad // tm,),
                in_specs=[
                    pl.BlockSpec((tm, D), lambda i: (i, 0)),
                    # Grid-invariant weight/bias: single buffer when supported.
                    pl.BlockSpec((D, V), lambda i: (0, 0), **inv_kwargs),
                    pl.BlockSpec((1, V), lambda i: (0, 0), **inv_kwargs),
                ],
                out_specs=pl.BlockSpec((tm, V), lambda i: (i, 0)),
            ),
            compiler_params=pltpu.CompilerParams(
                dimension_semantics=("parallel",),
                vmem_limit_bytes=int(vmem_budget_bytes),
            ),
            cost_estimate=cost,
        )(x2d, w_c, b2d)
        return out[:M].reshape(B, S, V)

    # ---------------- vocab-tiled two-pass path ----------------
    def _vtile_bytes(tm_, tv_):
        m_pad_ = _round_up(M, tm_)
        return (2 * D * tv_ * wsz            # weight double buffer
                + 2 * tm_ * D_lanes * xsz    # x double buffer
                + 2 * tm_ * tv_ * osz        # out double buffer
                + 2 * 8 * tv_ * bsz          # bias (sublane-padded)
                + 2 * m_pad_ * 512           # m/l scratch (lane-padded f32)
                + (1 << 20))                 # misc headroom

    # Shrink tm if even a 128-wide vocab tile would not fit.
    while _vtile_bytes(tm, 128) > vmem_budget_bytes and tm > row_align:
        new_tm = _round_up(max(row_align, tm // 2), row_align)
        if new_tm == tm:
            break
        tm = new_tm

    if tv is None:
        tv = 512                              # 2x256-MXU-friendly floor (v6e/v7x)
        while tv > 128 and _vtile_bytes(tm, tv) > vmem_budget_bytes:
            tv //= 2
        while (_vtile_bytes(tm, 2 * tv) <= vmem_budget_bytes
               and 2 * tv <= _round_up(V, 256)):
            tv *= 2
    tv = min(_round_up(int(tv), 128), _round_up(V, 128))

    M_pad = _round_up(M, tm)
    V_pad = _round_up(V, tv)
    if M_pad != M:
        x2d = jnp.pad(x2d, ((0, M_pad - M), (0, 0)))

    w_p, b_p = w_c, bias
    if V_pad != V:
        # Padded vocab columns: zero weights + very negative bias so they add
        # exp(...)=0 to the softmax normalizer; sliced off below.
        w_p = jnp.pad(w_c, ((0, 0), (0, V_pad - V)))
        b_p = jnp.pad(bias, ((0, V_pad - V),), constant_values=_NEG_INF_PAD)
    b2d = b_p.reshape(1, V_pad)

    nrow = M_pad // tm
    nv = V_pad // tv
    cost = pl.CostEstimate(
        flops=2 * 2 * M_pad * D * V_pad,                       # matmul done twice
        transcendentals=M_pad * V_pad + M_pad,
        bytes_accessed=(2 * nv * M_pad * D * xsz               # x re-streamed
                        + 2 * D * V_pad * wsz                  # weight, 2x total
                        + 2 * V_pad * bsz + M_pad * V_pad * osz),
    )

    # NOTE: the row axis (innermost) is independent and could be megacore-split on
    # v7x; kept "arbitrary" here because only leading parallel axes are reliably
    # partitioned across JAX versions.
    out = pl.pallas_call(
        _proj_logsoftmax_vtile_kernel,
        out_shape=jax.ShapeDtypeStruct((M_pad, V_pad), out_dtype),
        grid_spec=pltpu.PrefetchScalarGridSpec(
            num_scalar_prefetch=0,
            grid=(2, nv, nrow),                # pass, vocab tile, row tile (innermost)
            in_specs=[
                pl.BlockSpec((tm, D), lambda p, j, i: (i, 0)),
                pl.BlockSpec((D, tv), lambda p, j, i: (0, j)),   # changes with j only
                pl.BlockSpec((1, tv), lambda p, j, i: (0, j)),
            ],
            # Pass 0 pins the output block at (0, 0) so no block is flushed before
            # its (single) pass-1 write; pass 1 visits each (i, j) block exactly once.
            out_specs=pl.BlockSpec((tm, tv), lambda p, j, i: (i * p, j * p)),
            scratch_shapes=[
                pltpu.VMEM((M_pad, 1), jnp.float32),   # running max  m (all rows)
                pltpu.VMEM((M_pad, 1), jnp.float32),   # running sum  l (all rows)
            ],
        ),
        compiler_params=pltpu.CompilerParams(
            dimension_semantics=("arbitrary", "arbitrary", "arbitrary"),
            vmem_limit_bytes=int(vmem_budget_bytes),
        ),
        cost_estimate=cost,
    )(x2d, w_p, b2d)

    if V_pad != V:
        out = out[:, :V]
    return out[:M].reshape(B, S, V)


if __name__ == "__main__":
    # ---- Test 1: small shapes, full-vocab single-pass path, f32 compute ----
    B, S, D, V = 2, 8, 32, 128
    kx, kw, kb = jax.random.split(jax.random.PRNGKey(0), 3)
    bound = 1.0 / math.sqrt(D)   # nn.Linear-style U(-1/sqrt(d_model), 1/sqrt(d_model))
    weight = jax.random.uniform(kw, (D, V), jnp.float32, -bound, bound)
    bias = jax.random.uniform(kb, (V,), jnp.float32, -bound, bound)
    x = jax.random.normal(kx, (B, S, D), jnp.float32)

    ref1 = jax.nn.log_softmax(jnp.einsum("bsd,dv->bsv", x, weight) + bias, axis=-1)
    out1 = jax.block_until_ready(projection_layer(x, weight, bias, compute_dtype=None))
    assert out1.shape == (B, S, V)
    assert jnp.allclose(out1, ref1, atol=1e-4, rtol=1e-5), "fullv f32 path mismatch"

    # ---- Test 2: force the vocab-tiled two-pass path (pass-outer / rows-inner grid,
    #      full-M m/l scratch, vocab padding) with multiple row and vocab tiles. ----
    B2, S2, D2, V2 = 2, 24, 32, 200
    kx2, kw2, kb2 = jax.random.split(jax.random.PRNGKey(1), 3)
    bound2 = 1.0 / math.sqrt(D2)
    weight2 = jax.random.uniform(kw2, (D2, V2), jnp.float32, -bound2, bound2)
    bias2 = jax.random.uniform(kb2, (V2,), jnp.float32, -bound2, bound2)
    x2 = jax.random.normal(kx2, (B2, S2, D2), jnp.float32)

    ref2 = jax.nn.log_softmax(jnp.einsum("bsd,dv->bsv", x2, weight2) + bias2, axis=-1)
    out2 = jax.block_until_ready(
        projection_layer(x2, weight2, bias2, tm=16, tv=128, compute_dtype=None)
    )
    assert out2.shape == (B2, S2, V2)
    assert bool(jnp.all(jnp.isfinite(out2))), "vtile path produced non-finite values"
    assert jnp.allclose(out2, ref2, atol=1e-4, rtol=1e-5), "vtile path mismatch"

    # ---- Test 3: default settings (bf16 matmul operands, f32 epilogue/output). ----
    out3 = jax.block_until_ready(projection_layer(x, weight, bias))
    assert out3.shape == (B, S, V)
    assert jnp.allclose(out3, ref1, atol=3e-2), "default bf16-compute path mismatch"

    print("KERNEL_OK")
</pallas_src>

<mosaic_0001>
module attributes {stable_mosaic.version = 11 : i64} {
  func.func @_probe(%arg0: i32, %arg1: memref<8x128xf32, #tpu.memory_space<vmem>>, %arg2: memref<8x128xf32, #tpu.memory_space<vmem>>) attributes {dimension_semantics = [#tpu.dimension_semantics<arbitrary>], iteration_bounds = array<i64: 2>, scalar_prefetch = 0 : i64, scratch_operands = 0 : i64, tpu.core_type = #tpu.core_type<tc>, window_params = [{pipeline_mode = #tpu.pipeline_mode<synchronous>, transform_indices = @transform_0, window_bounds = array<i64: 8, 128>}, {transform_indices = @transform_1, window_bounds = array<i64: 8, 128>}]} {
    %c0 = arith.constant 0 : index
    %c0_0 = arith.constant 0 : index
    %0 = vector.load %arg1[%c0, %c0_0] : memref<8x128xf32, #tpu.memory_space<vmem>>, vector<8x128xf32>
    %cst = arith.constant 1.000000e+00 : f32
    %1 = vector.broadcast %cst : f32 to vector<8x128xf32>
    %2 = arith.addf %0, %1 : vector<8x128xf32>
    %c0_1 = arith.constant 0 : index
    %c0_2 = arith.constant 0 : index
    %3 = vector.load %arg2[%c0_1, %c0_2] : memref<8x128xf32, #tpu.memory_space<vmem>>, vector<8x128xf32>
    tpu.vector_store %arg2[%c0_1, %c0_2], %2 {strides = array<i32>} : memref<8x128xf32, #tpu.memory_space<vmem>>, vector<8x128xf32>,
    return
  }
  func.func @transform_0(%arg0: i32) -> (i32, i32) {
    %c0_i32 = arith.constant 0 : i32
    %c0_i32_0 = arith.constant 0 : i32
    %c0_i32_1 = arith.constant 0 : i32
    return %c0_i32, %c0_i32_0 : i32, i32
  }
  func.func @transform_1(%arg0: i32) -> (i32, i32) {
    %c0_i32 = arith.constant 0 : i32
    %c0_i32_0 = arith.constant 0 : i32
    return %arg0, %c0_i32 : i32, i32
  }
}

module attributes {stable_mosaic.version = 11 : i64} {
  func.func @_proj_logsoftmax_fullv_kernel(%arg0: i32, %arg1: memref<16x32xf32, #tpu.memory_space<vmem>>, %arg2: memref<32x128xf32, #tpu.memory_space<vmem>>, %arg3: memref<1x128xf32, #tpu.memory_space<vmem>>, %arg4: memref<16x128xf32, #tpu.memory_space<vmem>>) attributes {dimension_semantics = [#tpu.dimension_semantics<parallel>], iteration_bounds = array<i64: 1>, scalar_prefetch = 0 : i64, scratch_operands = 0 : i64, tpu.core_type = #tpu.core_type<tc>, window_params = [{transform_indices = @transform_0, window_bounds = array<i64: 16, 32>}, {pipeline_mode = #tpu.pipeline_mode<synchronous>, transform_indices = @transform_1, window_bounds = array<i64: 32, 128>}, {pipeline_mode = #tpu.pipeline_mode<synchronous>, transform_indices = @transform_2, window_bounds = array<i64: 1, 128>}, {transform_indices = @transform_3, window_bounds = array<i64: 16, 128>}]} {
    %c0 = arith.constant 0 : index
    %c0_0 = arith.constant 0 : index
    %0 = vector.load %arg2[%c0, %c0_0] : memref<32x128xf32, #tpu.memory_space<vmem>>, vector<32x128xf32>
    %c0_1 = arith.constant 0 : index
    %c0_2 = arith.constant 0 : index
    %1 = vector.load %arg3[%c0_1, %c0_2] : memref<1x128xf32, #tpu.memory_space<vmem>>, vector<1x128xf32>
    %c0_3 = arith.constant 0 : index
    %c0_4 = arith.constant 0 : index
    %2 = vector.load %arg1[%c0_3, %c0_4] : memref<16x32xf32, #tpu.memory_space<vmem>>, vector<16x32xf32>
    %cst = arith.constant dense<0.000000e+00> : vector<16x128xf32>
    %3 = tpu.matmul %2, %0, %cst {dimension_numbers = #tpu.dot_dimension_numbers<[1], [0], [0], [1], [0, 0, 1, 1], [], []>} : vector<16x32xf32>, vector<32x128xf32>, vector<16x128xf32> -> vector<16x128xf32>
    %4 = vector.broadcast %1 : vector<1x128xf32> to vector<16x128xf32>
    %5 = arith.addf %3, %4 : vector<16x128xf32>
    %cst_5 = arith.constant dense<0xFF800000> : vector<16xf32>
    %6 = vector.multi_reduction <maximumf>, %5, %cst_5 [1] : vector<16x128xf32> to vector<16xf32>
    %7 = vector.shape_cast %6 : vector<16xf32> to vector<16x1xf32>
    %8 = vector.broadcast %7 : vector<16x1xf32> to vector<16x128xf32>
    %9 = arith.subf %5, %8 : vector<16x128xf32>
    %10 = math.exp %9 : vector<16x128xf32>
    %cst_6 = arith.constant dense<0.000000e+00> : vector<16xf32>
    %11 = vector.multi_reduction <add>, %10, %cst_6 [1] : vector<16x128xf32> to vector<16xf32>
    %12 = vector.shape_cast %11 : vector<16xf32> to vector<16x1xf32>
    %13 = math.log %12 : vector<16x1xf32>
    %14 = vector.broadcast %13 : vector<16x1xf32> to vector<16x128xf32>
    %15 = arith.subf %9, %14 : vector<16x128xf32>
    %c0_7 = arith.constant 0 : index
    %c0_8 = arith.constant 0 : index
    %16 = vector.load %arg4[%c0_7, %c0_8] : memref<16x128xf32, #tpu.memory_space<vmem>>, vector<16x128xf32>
    tpu.vector_store %arg4[%c0_7, %c0_8], %15 {strides = array<i32>} : memref<16x128xf32, #tpu.memory_space<vmem>>, vector<16x128xf32>,
    return
  }
  func.func @transform_0(%arg0: i32) -> (i32, i32) {
    %c0_i32 = arith.constant 0 : i32
    %c0_i32_0 = arith.constant 0 : i32
    return %arg0, %c0_i32 : i32, i32
  }
  func.func @transform_1(%arg0: i32) -> (i32, i32) {
    %c0_i32 = arith.constant 0 : i32
    %c0_i32_0 = arith.constant 0 : i32
    %c0_i32_1 = arith.constant 0 : i32
    return %c0_i32, %c0_i32_0 : i32, i32
  }
  func.func @transform_2(%arg0: i32) -> (i32, i32) {
    %c0_i32 = arith.constant 0 : i32
    %c0_i32_0 = arith.constant 0 : i32
    %c0_i32_1 = arith.constant 0 : i32
    return %c0_i32, %c0_i32_0 : i32, i32
  }
  func.func @transform_3(%arg0: i32) -> (i32, i32) {
    %c0_i32 = arith.constant 0 : i32
    %c0_i32_0 = arith.constant 0 : i32
    return %arg0, %c0_i32 : i32, i32
  }
}

</mosaic_0001>

<llo_original>
// kernel: tpu_custom_call.1
$region0: #{tpu_custom_call.1}
  #allocation0 [shape = 'u32[]', space=smem, size = 0x4, offset = 0x4, fixed_abs, tag = 'smem constant byte address 0x4 - core index']
  #allocation1 [shape = 'u32[144,128]{1,0:T(1,128)}', space=vmem, size = 0x12000, scoped, tag = 'internal scratch']
  %s0 = inlined_call_operand.hbm [shape: f32[8,128], index: 0, kind: input, shape index: {}]
  %s1 = inlined_call_operand.hbm [shape: f32[16,128], index: 1, kind: output, shape index: {}]
  %s2 = sld [smem:[#allocation0]]
  $region41: #{tpu_custom_call.1} parent=0
    _
  %s4 = ssub.s32 1, %s2
  %s5 = scalar_select 0, %s4, %s2
  $region1: #{tpu_custom_call.1} parent=0
    #allocation2 [shape = 'u8[4096]{0}', space=vmem, size = 0x1000, scoped, tag = 'input window, operand 0, single buffered']
    #allocation3 [shape = 's32[2]{0}', space=sflag, size = 0x8, scoped, tag = 'scoped memory for tpu_custom_call.1']
    #allocation4 [shape = 's32[2]{0}', space=sflag, size = 0x8, scoped, tag = 'scoped memory for tpu_custom_call.1']
    #allocation5 [shape = 'u8[8192]{0}', space=vmem, size = 0x2000, scoped, tag = 'output window, operand 0']
    %6 = vsyncpa [#allocation3], 0
    %7 = vsyncpa [#allocation4], 0
    %s8 = scalar_lea.sflag [#allocation4], 1
    %9 = vsyncpa %s8, 0
    loop: start=0, step=1, limit=4
    $region2: #{tpu_custom_call.1} parent=1 // loop_pre_header
      _
    $region3: #{tpu_custom_call.1} parent=1 // loop_header
      %s11 = sphi 0, %s15
      %p12 = scmp.ge.s32.totalorder %s11, 4
      %s19 = sphi 0, %s19
      %s21 = sphi 0, %s19
      %s22 = sphi 0, %s21
      %s36 = sphi 0, %s22
      %s42 = sphi 0, %s44
      %s45 = sphi 0, %s42
      %s46 = sphi 0, %s45
      %s62 = sphi 0, %s46
    $region4: #{tpu_custom_call.1} parent=1 // loop_header_branch
      %14 = sbr.rel (%p12) target = $region8
    $region5: #{tpu_custom_call.1} parent=1 // loop_body
      %s16 = ssub.s32 %s11, 1
      %s17 = ssub.s32 %s11, 2
      %s18 = sadd.s32 %s11, 1
      %s20 = sadd.s32 %s19, 1
      %p23 = scmp.eq.s32.totalorder %s11, 1
      %p24 = scmp.ne.s32.totalorder %s19, %s21
      %p25 = scmp.eq.s32.totalorder %s11, 0
      %p26 = por %p24, %p25
      %p27 = scmp.ne.s32.totalorder %s19, %s21
      %p28 = scmp.eq.s32.totalorder %s16, 1
      %p29 = por %p27, %p28
      %p30 = scmp.ne.s32.totalorder %s21, %s22
      %p31 = scmp.eq.s32.totalorder %s16, 0
      %p32 = por %p30, %p31
      %p33 = scmp.ne.s32.totalorder %s21, %s22
      %p34 = scmp.eq.s32.totalorder %s17, 1
      %p35 = por %p33, %p34
      %p37 = scmp.ne.s32.totalorder %s22, %s36
      %p38 = scmp.eq.s32.totalorder %s17, 0
      %p39 = por %p37, %p38
      %s40 = ssub.s32 %s11, %s18
      %p41 = scmp.eq.s32.totalorder %s40, 0
      %s43 = sadd.s32 %s42, 1
      %s44 = scalar_select %p41, %s42, %s43
      %p47 = pneg %p41
      %p48 = scmp.eq.s32.totalorder %s11, 1
      %p49 = por %p47, %p48
      %p50 = scmp.ne.s32.totalorder %s42, %s45
      %p51 = scmp.eq.s32.totalorder %s11, 0
      %p52 = por %p50, %p51
      %p53 = scmp.ne.s32.totalorder %s42, %s45
      %p54 = scmp.eq.s32.totalorder %s16, 1
      %p55 = por %p53, %p54
      %p56 = scmp.ne.s32.totalorder %s45, %s46
      %p57 = scmp.eq.s32.totalorder %s16, 0
      %p58 = por %p56, %p57
      %p59 = scmp.ne.s32.totalorder %s45, %s46
      %p60 = scmp.eq.s32.totalorder %s17, 1
      %p61 = por %p59, %p60
      %p63 = scmp.ne.s32.totalorder %s46, %s62
      %p64 = scmp.eq.s32.totalorder %s17, 0
      %p65 = por %p63, %p64
      %p66 = scmp.le.s32.totalorder 1, %s11
      %p67 = scmp.lt.s32.totalorder %s11, 3
      %p68 = pnand %p66, %p67
      %p69 = pneg %p68
      // Predicated region
      $region9: #{tpu_custom_call.1} parent=5 // pred_check
        _
      $region10: #{tpu_custom_call.1} parent=5 // pred_check_branch
        %71 = sbr.rel (%p68) target = $region12
      $region11: #{tpu_custom_call.1} parent=5 // pred_region
        %s72 = ssub.s32 %s11, 1
        // Predicated region
        $region13: #{tpu_custom_call.1} parent=11 // pred_check
          %p73 = pneg %p32
        $region14: #{tpu_custom_call.1} parent=11 // pred_check_branch
          %75 = sbr.rel (%p73) target = $region16
        $region15: #{tpu_custom_call.1} parent=11 // pred_region
          %s77 = ssub.s32 128, 128
          %78 = vsyncadd [#allocation3], %s77
          %s80 = sshll.u32 [#allocation2], 4
          %s81 = int_to_ptr.vmem [resolvable:$true] %s80
          %83 = dma.hbm_to_vmem [thread:$0]  %s0, 128, %s81, [#allocation3]
        $region16: #{tpu_custom_call.1} parent=11 // pred_fallthru
          _
      $region12: #{tpu_custom_call.1} parent=5 // pred_fallthru
        _
      %p84 = scmp.lt.s32.totalorder %s11, 2
      // Predicated region
      $region17: #{tpu_custom_call.1} parent=5 // pred_check
        %p85 = pneg %p84
      $region18: #{tpu_custom_call.1} parent=5 // pred_check_branch
        %87 = sbr.rel (%p85) target = $region20
      $region19: #{tpu_custom_call.1} parent=5 // pred_region
        _
      $region20: #{tpu_custom_call.1} parent=5 // pred_fallthru
        _
      %p88 = scmp.le.s32.totalorder 1, %s11
      %p89 = scmp.lt.s32.totalorder %s11, 3
      %p90 = pnand %p88, %p89
      %p91 = pneg %p90
      // Predicated region
      $region21: #{tpu_custom_call.1} parent=5 // pred_check
        _
      $region22: #{tpu_custom_call.1} parent=5 // pred_check_branch
        %93 = sbr.rel (%p90) target = $region24
      $region23: #{tpu_custom_call.1} parent=5 // pred_region
        %s94 = ssub.s32 %s11, 1
        // Predicated region
        $region25: #{tpu_custom_call.1} parent=23 // pred_check
          %p95 = pneg %p32
        $region26: #{tpu_custom_call.1} parent=23 // pred_check_branch
          %97 = sbr.rel (%p95) target = $region28
        $region27: #{tpu_custom_call.1} parent=23 // pred_region
          %98 = dma.done [#allocation3], 128
        $region28: #{tpu_custom_call.1} parent=23 // pred_fallthru
          _
        %p99 = pneg %p32
        %p100 = pneg %p29
        %p101 = pneg %p58
        %p102 = pneg %p55
        %s103 = sand.u32 %s45, 1
        %s104 = scalar_lea.sflag [#allocation4], %s103
        %s105 = sand.u32 %s45, 1
        %s106 = smul.addr %s105, 8
        %s107 = scalar_lea.vmem [#allocation5], %s106
        %v108 = vld [vmem:[#allocation2] sm:$0xff]
        %v109 = vadd.f32 %v108, 1.0
        %110 = vst [vmem:[%s107] sm:$0xff] %v109
        %s111 = sand.u32 %s45, 1
        %s112 = scalar_lea.sflag [#allocation4], %s111
        %s113 = sand.u32 %s45, 1
        %s114 = smul.addr %s113, 8
        %s115 = scalar_lea.vmem [#allocation5], %s114
        // Predicated region
        $region29: #{tpu_custom_call.1} parent=23 // pred_check
          %p116 = pneg %p55
        $region30: #{tpu_custom_call.1} parent=23 // pred_check_branch
          %118 = sbr.rel (%p116) target = $region32
        $region31: #{tpu_custom_call.1} parent=23 // pred_region
          %s120 = ssub.s32 128, 128
          %121 = vsyncadd %s112, %s120
          %s122 = smul.addr %s16, 128
          %s123 = scalar_lea.hbm %s1, %s122
          %s125 = sshll.u32 %s115, 4
          %s126 = int_to_ptr.vmem [resolvable:$true] %s125
          %128 = dma.vmem_to_hbm [thread:$0]  %s126, 128, %s123, %s112
        $region32: #{tpu_custom_call.1} parent=23 // pred_fallthru
          _
      $region24: #{tpu_custom_call.1} parent=5 // pred_fallthru
        _
      %p129 = scmp.le.s32.totalorder 2, %s11
      // Predicated region
      $region33: #{tpu_custom_call.1} parent=5 // pred_check
        %p130 = pneg %p129
      $region34: #{tpu_custom_call.1} parent=5 // pred_check_branch
        %132 = sbr.rel (%p130) target = $region36
      $region35: #{tpu_custom_call.1} parent=5 // pred_region
        %s133 = ssub.s32 %s11, 2
        // Predicated region
        $region37: #{tpu_custom_call.1} parent=35 // pred_check
          %p134 = pneg %p61
        $region38: #{tpu_custom_call.1} parent=35 // pred_check_branch
          %136 = sbr.rel (%p134) target = $region40
        $region39: #{tpu_custom_call.1} parent=35 // pred_region
          %s137 = sand.u32 %s46, 1
          %s138 = scalar_lea.sflag [#allocation4], %s137
          %s139 = sand.u32 %s46, 1
          %s140 = smul.addr %s139, 8
          %s141 = scalar_lea.vmem [#allocation5], %s140
          %142 = dma.done %s138, 128
        $region40: #{tpu_custom_call.1} parent=35 // pred_fallthru
          _
      $region36: #{tpu_custom_call.1} parent=5 // pred_fallthru
        _
    $region6: #{tpu_custom_call.1} parent=1 // loop_footer
      %s15 = sadd.s32 1, %s11
    $region7: #{tpu_custom_call.1} parent=1 // loop_footer_branch
      %10 = sbr.rel target = $region3
    $region8: #{tpu_custom_call.1} parent=1 // loop_exit
      _
    %143 = vsyncpa [#allocation3], 1
    %s144 = scalar_lea.sflag [#allocation3], 1
    %145 = vsyncpa %s144, 1
    %146 = vsyncpa [#allocation4], 1
    %s147 = scalar_lea.sflag [#allocation4], 1
    %148 = vsyncpa %s147, 1

// kernel: tpu_custom_call.1
$region0: #{tpu_custom_call.1}
  #allocation0 [shape = 'u32[]', space=smem, size = 0x4, offset = 0x4, fixed_abs, tag = 'smem constant byte address 0x4 - core index']
  #allocation1 [shape = 'u32[144,128]{1,0:T(1,128)}', space=vmem, size = 0x12000, scoped, tag = 'internal scratch']
  %s0 = inlined_call_operand.hbm [shape: f32[16,32], index: 0, kind: input, shape index: {}]
  %s1 = inlined_call_operand.hbm [shape: f32[32,128], index: 1, kind: input, shape index: {}]
  %s2 = inlined_call_operand.vmem [shape: f32[1,128], index: 2, kind: input, shape index: {}]
  %s3 = inlined_call_operand.hbm [shape: f32[16,128], index: 3, kind: output, shape index: {}]
  %s4 = sld [smem:[#allocation0]]
  $region30: #{tpu_custom_call.1} parent=0
    _
  %s6 = ssub.s32 1, %s4
  %s7 = scalar_select 0, %s6, %s4
  $region1: #{tpu_custom_call.1} parent=0
    #allocation2 [shape = 'u8[8192]{0}', space=vmem, size = 0x2000, scoped, tag = 'input window, operand 0, single buffered']
    #allocation3 [shape = 's32[1]{0}', space=sflag, size = 0x4, scoped, tag = 'scoped memory for tpu_custom_call.1']
    #allocation4 [shape = 's32[1]{0}', space=sflag, size = 0x4, scoped, tag = 'scoped memory for tpu_custom_call.1']
    #allocation5 [shape = 'u8[16384]{0}', space=vmem, size = 0x4000, scoped, tag = 'input window, operand 1, single buffered']
    #allocation6 [shape = 's32[1]{0}', space=sflag, size = 0x4, scoped, tag = 'scoped memory for tpu_custom_call.1']
    #allocation7 [shape = 'u8[8192]{0}', space=vmem, size = 0x2000, scoped, tag = 'output window, operand 0, single buffered']
    %8 = vsyncpa [#allocation3], 0
    %9 = vsyncpa [#allocation6], 0
    %10 = vsyncpa [#allocation4], 0
    // Predicated region
    $region2: #{tpu_custom_call.1} parent=1 // pred_check
      _
    $region3: #{tpu_custom_call.1} parent=1 // pred_check_branch
      %12 = sbr.rel (0) target = $region5
    $region4: #{tpu_custom_call.1} parent=1 // pred_region
      %s14 = ssub.s32 256, 256
      %15 = vsyncadd [#allocation3], %s14
      %s16 = sshll.u32 [#allocation2], 4
      %s17 = int_to_ptr.vmem [resolvable:$true] %s16
      %22 = dma.hbm_to_vmem [thread:$0]  %s0, 256, %s17, [#allocation3], 128, 128, 8
    $region5: #{tpu_custom_call.1} parent=1 // pred_fallthru
      _
    // Predicated region
    $region6: #{tpu_custom_call.1} parent=1 // pred_check
      _
    $region7: #{tpu_custom_call.1} parent=1 // pred_check_branch
      %24 = sbr.rel (0) target = $region9
    $region8: #{tpu_custom_call.1} parent=1 // pred_region
      %s26 = ssub.s32 512, 512
      %27 = vsyncadd [#allocation6], %s26
      %s28 = sshll.u32 [#allocation5], 4
      %s29 = int_to_ptr.vmem [resolvable:$true] %s28
      %34 = dma.hbm_to_vmem [thread:$0]  %s1, 512, %s29, [#allocation6], 128, 128, 8
    $region9: #{tpu_custom_call.1} parent=1 // pred_fallthru
      _
    // Predicated region
    $region10: #{tpu_custom_call.1} parent=1 // pred_check
      _
    $region11: #{tpu_custom_call.1} parent=1 // pred_check_branch
      %36 = sbr.rel (0) target = $region13
    $region12: #{tpu_custom_call.1} parent=1 // pred_region
      _
    $region13: #{tpu_custom_call.1} parent=1 // pred_fallthru
      _
    // Predicated region
    $region14: #{tpu_custom_call.1} parent=1 // pred_check
      _
    $region15: #{tpu_custom_call.1} parent=1 // pred_check_branch
      %38 = sbr.rel (0) target = $region17
    $region16: #{tpu_custom_call.1} parent=1 // pred_region
      %39 = dma.done [#allocation3], 256
    $region17: #{tpu_custom_call.1} parent=1 // pred_fallthru
      _
    // Predicated region
    $region18: #{tpu_custom_call.1} parent=1 // pred_check
      _
    $region19: #{tpu_custom_call.1} parent=1 // pred_check_branch
      %41 = sbr.rel (0) target = $region21
    $region20: #{tpu_custom_call.1} parent=1 // pred_region
      %42 = dma.done [#allocation6], 512
    $region21: #{tpu_custom_call.1} parent=1 // pred_fallthru
      _
    %v43 = vld [vmem:[#allocation5] sm:$0xff]
    %v44 = vld [vmem:[#allocation5 + $0x8] sm:$0xff]
    %v45 = vld [vmem:[#allocation5 + $0x10] sm:$0xff]
    %v46 = vld [vmem:[#allocation5 + $0x18] sm:$0xff]
    %v47 = vld [vmem:[%s2] sm:$0x1]
    %v48 = vld [vmem:[#allocation2] sm:$0xff]
    %v49 = vld [vmem:[#allocation2 + $0x8] sm:$0xff]
    %v51 = vlaneseq
    %v52 = vshrl.u32 %v51, 7
    %v53 = vsub.s32 0, %v52
    %v54 = vrot.slane %v47, %v53
    %vm56 = vcmask 261120
    %v58 = vsel %vm56, %v48, 0
    %v61 = vsel %vm56, %v49, 0
    %63 = vmatprep.subr.mxu0 0.0
    %64 = vmatpush1.msra.mxu0 %v43
    %65 = vmatprep.subr.mxu0 0.0
    %66 = vmatpush1.msra.mxu0 %v44
    %67 = vmatprep.subr.mxu0 0.0
    %68 = vmatpush1.msra.mxu0 %v45
    %69 = vmatprep.subr.mxu0 0.0
    %70 = vmatpush1.msra.mxu0 %v46
    %71 = vmatprep.subr.mxu0 0.0
    %72 = vmatpush1.msra.mxu0 0.0
    %73 = vmatprep.subr.mxu0 0.0
    %74 = vmatpush1.msra.mxu0 0.0
    %75 = vmatprep.subr.mxu0 0.0
    %76 = vmatpush1.msra.mxu0 0.0
    %77 = vmatprep.subr.mxu0 0.0
    %78 = vmatpush1.msra.mxu0 0.0
    %79 = vmatprep.subr.mxu0 0.0
    %80 = vmatpush1.msra.mxu0 0.0
    %81 = vmatprep.subr.mxu0 0.0
    %82 = vmatpush1.msra.mxu0 0.0
    %83 = vmatprep.subr.mxu0 0.0
    %84 = vmatpush1.msra.mxu0 0.0
    %85 = vmatprep.subr.mxu0 0.0
    %86 = vmatpush1.msra.mxu0 0.0
    %87 = vmatprep.subr.mxu0 0.0
    %88 = vmatpush1.msra.mxu0 0.0
    %89 = vmatprep.subr.mxu0 0.0
    %90 = vmatpush1.msra.mxu0 0.0
    %91 = vmatprep.subr.mxu0 0.0
    %92 = vmatpush1.msra.mxu0 0.0
    %93 = vmatprep.subr.mxu0 0.0
    %94 = vmatpush1.msra.mxu0 0.0
    %95 = vmatprep.subr.mxu0 0.0
    %96 = vmatpush1.msra.mxu0 0.0
    %97 = vmatprep.subr.mxu0 0.0
    %98 = vmatpush1.msra.mxu0 0.0
    %99 = vmatprep.subr.mxu0 0.0
    %100 = vmatpush1.msra.mxu0 0.0
    %101 = vmatprep.subr.mxu0 0.0
    %102 = vmatpush1.msra.mxu0 0.0
    %103 = vmatprep.subr.mxu0 0.0
    %104 = vmatpush1.msra.mxu0 0.0
    %105 = vmatprep.subr.mxu0 0.0
    %106 = vmatpush1.msra.mxu0 0.0
    %107 = vmatprep.subr.mxu0 0.0
    %108 = vmatpush1.msra.mxu0 0.0
    %109 = vmatprep.subr.mxu0 0.0
    %110 = vmatpush1.msra.mxu0 0.0
    %111 = vmatprep.subr.mxu0 0.0
    %112 = vmatpush1.msra.mxu0 0.0
    %113 = vmatprep.subr.mxu0 0.0
    %114 = vmatpush1.msra.mxu0 0.0
    %115 = vmatprep.subr.mxu0 0.0
    %116 = vmatpush1.msra.mxu0 0.0
    %117 = vmatprep.subr.mxu0 0.0
    %118 = vmatpush1.msra.mxu0 0.0
    %119 = vmatprep.subr.mxu0 0.0
    %120 = vmatpush1.msra.mxu0 0.0
    %121 = vmatprep.subr.mxu0 0.0
    %122 = vmatpush1.msra.mxu0 0.0
    %123 = vmatprep.subr.mxu0 0.0
    %124 = vmatpush1.msra.mxu0 0.0
    %125 = vmatprep.subr.mxu0 0.0
    %126 = vmatpush1.msra.mxu0 0.0
    %127 = vmatprep.mubr.f32.mxu0 0.0
    %128 = vmatmul.mubr.f32.gmra.mrb[0].mxu0 %v58
    %v129 = vpop.f32.mrb[0].mxu0
    %v130 = vadd.f32 %v54, %v129
    %v131 = vpop.f32.mrb[0].mxu0
    %132 = vmatprep.mubr.f32.mxu0 0.0
    %133 = vmatmul.mubr.f32.gmra.mrb[0].mxu0 %v61
    %v134 = vpop.f32.mrb[0].mxu0
    %v135 = vadd.f32 %v54, %v134
    %v136 = vpop.f32.mrb[0].mxu0
    %137 = vdwg.mxu0
    %138 = vmax.xlane.f32.xlu0 %v130
    %v139 = vpop.xlane.xlu0 %138
    %140 = vmax.xlane.f32.xlu0 %v135
    %v141 = vpop.xlane.xlu0 %140
    %v142 = vsub.f32 %v130, %v139
    %v143 = vsub.f32 %v135, %v141
    %v144 = vmul.f32 %v142, 1.442695
    %v145 = vpow.pop %v144
    %v146 = vmul.f32 %v143, 1.442695
    %v147 = vpow.pop %v146
    %148 = vadd.xlane.f32.xlu0 %v145
    %v149 = vpop.xlane.xlu0 %148
    %150 = vadd.xlane.f32.xlu0 %v147
    %v151 = vpop.xlane.xlu0 %150
    %v152 = vlog2.pop %v149
    %v153 = vmul.f32 %v152, 0.6931472
    %v154 = vlog2.pop %v151
    %v155 = vmul.f32 %v154, 0.6931472
    %v156 = vsub.f32 %v142, %v153
    %v157 = vsub.f32 %v143, %v155
    %158 = vst [vmem:[#allocation7] sm:$0xff] %v156
    %159 = vst [vmem:[#allocation7 + $0x8] sm:$0xff] %v157
    // Predicated region
    $region22: #{tpu_custom_call.1} parent=1 // pred_check
      _
    $region23: #{tpu_custom_call.1} parent=1 // pred_check_branch
      %161 = sbr.rel (0) target = $region25
    $region24: #{tpu_custom_call.1} parent=1 // pred_region
      %s163 = ssub.s32 256, 256
      %164 = vsyncadd [#allocation4], %s163
      %s165 = sshll.u32 [#allocation7], 4
      %s166 = int_to_ptr.vmem [resolvable:$true] %s165
      %171 = dma.vmem_to_hbm [thread:$0]  %s166, 256, %s3, [#allocation4], 128, 128, 8
    $region25: #{tpu_custom_call.1} parent=1 // pred_fallthru
      _
    // Predicated region
    $region26: #{tpu_custom_call.1} parent=1 // pred_check
      _
    $region27: #{tpu_custom_call.1} parent=1 // pred_check_branch
      %173 = sbr.rel (0) target = $region29
    $region28: #{tpu_custom_call.1} parent=1 // pred_region
      %174 = dma.done [#allocation4], 256
    $region29: #{tpu_custom_call.1} parent=1 // pred_fallthru
      _
    %175 = vsyncpa [#allocation3], 1
    %176 = vsyncpa [#allocation6], 1
    %177 = vsyncpa [#allocation4], 1

</llo_original>
